<compile_context>
chip_gen: v7x
topology: tpu7x:2x2x1
jax: 0.10.0
libtpu: 0.0.40
codegen_flags: <defaults>
</compile_context>

<pallas_src>
import jax
import jax.numpy as jnp
from jax.experimental import pallas as pl
from jax.experimental.pallas import tpu as pltpu


# ---------------------------------------------------------------------------
# Pallas kernel: value head GEMV with lane-dense output
#   o[0, :] = (x @ w).T       x: (TM, H) bf16, w: (H, 1) bf16, o: (1, TM) bf16
# ---------------------------------------------------------------------------
def _vhead_kernel(x_ref, w_ref, o_ref):
    acc = jnp.dot(x_ref[...], w_ref[...], preferred_element_type=jnp.float32)  # (TM, 1) f32
    # Lane-densify: (TM, 1) column -> (1, TM) row (XLU relayout, cheap vs. the DMA).
    o_ref[...] = jnp.transpose(acc).astype(o_ref.dtype)


# ---------------------------------------------------------------------------
# Tile / VMEM sizing helpers
# ---------------------------------------------------------------------------
def _round_up(x, m):
    return (x + m - 1) // m * m


def _vmem_capacity_bytes():
    try:
        return int(pltpu.get_tpu_info().vmem_capacity_bytes)
    except Exception:
        return 64 * 1024 * 1024  # conservative default (v7x per-TC VMEM)


def _pick_tiling(M, H, itemsize=2):
    """Return (tile_m, vmem_limit_bytes, num_buffers) from the VMEM budget alone."""
    cap = _vmem_capacity_bytes()
    if cap <= 64 * 1024 * 1024:
        # v7x: 64 MiB/TC. Push the scoped limit to 7/8 of physical, keep default
        # double-buffering so the whole budget goes into tile height.
        vmem_limit = cap * 7 // 8
        nbuf = 2
    else:
        # v5e/v6e: 128 MiB physical. 96 MiB scoped limit; spare VMEM -> 3-deep
        # pipeline on the hidden-states stream to hide per-step DMA issue latency.
        vmem_limit = min(cap * 3 // 4, 100 * 1024 * 1024)
        nbuf = 3
    # Headroom for the weight / output blocks and pipeline bookkeeping.
    budget = max(vmem_limit - 4 * 1024 * 1024, 1 * 1024 * 1024)
    tile_m = budget // (nbuf * H * itemsize)
    tile_m = max(128, (tile_m // 128) * 128)            # lane-dense output rows
    tile_m = min(tile_m, max(16, _round_up(M, 16)))     # never taller than the token count
    return int(tile_m), int(vmem_limit), nbuf


def _x_block_spec(tile_m, H, nbuf, num_tiles):
    """Hidden-states BlockSpec; request a deeper pipeline when VMEM allows."""
    if nbuf > 2 and num_tiles >= nbuf and hasattr(pl, "Buffered"):
        try:
            return pl.BlockSpec((tile_m, H), lambda i: (i, 0),
                                pipeline_mode=pl.Buffered(nbuf))
        except TypeError:
            pass  # older API without pipeline_mode: fall back to default buffering
    return pl.BlockSpec((tile_m, H), lambda i: (i, 0))


# ---------------------------------------------------------------------------
# Wrapper: values = (hidden @ w).squeeze(-1), reshaped to [B, S]
# ---------------------------------------------------------------------------
def v_head_pallas(hidden_states, w, *, tile_m=None):
    """hidden_states: [B, S, H] bf16; w: [H, 1] bf16. Returns values [B, S] bf16."""
    B, S, H = hidden_states.shape
    M = B * S
    x2d = hidden_states.reshape(M, H)

    auto_tile_m, vmem_limit, nbuf = _pick_tiling(
        M, H, jnp.dtype(hidden_states.dtype).itemsize)
    if tile_m is None:
        tile_m = auto_tile_m

    num_tiles = pl.cdiv(M, tile_m)   # ragged tail handled by Pallas block masking
    m_pad = num_tiles * tile_m

    cost = pl.CostEstimate(
        flops=2 * M * H,
        transcendentals=0,
        bytes_accessed=M * H * 2 + H * 2 + m_pad * 2,
    )

    out = pl.pallas_call(
        _vhead_kernel,
        out_shape=jax.ShapeDtypeStruct((1, m_pad), jnp.bfloat16),
        grid_spec=pltpu.PrefetchScalarGridSpec(
            num_scalar_prefetch=0,
            grid=(num_tiles,),
            in_specs=[
                _x_block_spec(tile_m, H, nbuf, num_tiles),     # hidden rows
                pl.BlockSpec((H, 1), lambda i: (0, 0)),        # v_head weight
            ],
            out_specs=pl.BlockSpec((1, tile_m), lambda i: (0, i)),  # lane-dense row
        ),
        compiler_params=pltpu.CompilerParams(
            # Single token axis is parallel -> shards across v7x's 2 TensorCores
            # (TODO(synk): confirm both TCs issue DMAs in xprof on v7x).
            dimension_semantics=("parallel",),
            vmem_limit_bytes=vmem_limit,
        ),
        cost_estimate=cost,
    )(x2d, w)

    return out[0, :M].reshape(B, S)  # drop ragged padding, squeeze(-1)


# ---------------------------------------------------------------------------
# Synthetic stand-in for the base transformer (plain JAX glue)
# ---------------------------------------------------------------------------
def stub_rwtransformer(input_ids, attention_mask, embed_table):
    """Deterministic stub base model: embedding lookup -> bf16 hidden states [B, S, H].
    attention_mask would only matter inside the real model's attention layers."""
    del attention_mask
    return embed_table[input_ids]


def critic_model_forward(input_ids, attention_mask, params):
    hidden = stub_rwtransformer(input_ids, attention_mask, params["embed"])
    values = v_head_pallas(hidden, params["v_head_w"])
    return values  # [B, S] bf16


# ---------------------------------------------------------------------------
# Main
# ---------------------------------------------------------------------------
if __name__ == "__main__":
    key = jax.random.PRNGKey(0)
    k_emb, k_w, k_ids, k_h2, k_w2 = jax.random.split(key, 5)

    # ---- Test 1: small shapes, full module path (stub transformer + v_head) ----
    B, S, H = 2, 8, 32
    VOCAB = 64

    embed_table = (jax.random.normal(k_emb, (VOCAB, H), dtype=jnp.float32) * 0.02
                   ).astype(jnp.bfloat16)
    # nn.Linear(H, 1, bias=False).weight has shape (1, H); we store its transpose (H, 1).
    v_head_w = (jax.random.normal(k_w, (H, 1), dtype=jnp.float32) * (1.0 / H ** 0.5)
                ).astype(jnp.bfloat16)
    params = {"embed": embed_table, "v_head_w": v_head_w}

    input_ids = jax.random.randint(k_ids, (B, S), 0, VOCAB, dtype=jnp.int32)
    attention_mask = jnp.ones((B, S), dtype=jnp.int32).at[1, -2:].set(0)

    values = critic_model_forward(input_ids, attention_mask, params)
    values = jax.block_until_ready(values)

    # Reference (same math as the PyTorch module: mask is NOT applied to values).
    hidden_ref = embed_table[input_ids]
    values_ref = jnp.squeeze(
        jnp.dot(hidden_ref.astype(jnp.float32), v_head_w.astype(jnp.float32),
                precision=jax.lax.Precision.HIGHEST), -1).astype(jnp.bfloat16)

    assert values.shape == (B, S)
    assert values.dtype == jnp.bfloat16
    assert jnp.allclose(values.astype(jnp.float32),
                        values_ref.astype(jnp.float32), atol=1e-2, rtol=1e-2)

    # ---- Test 2: multi-tile grid + ragged last block + lane-dense output path ----
    B2, S2, H2 = 2, 333, 256          # M = 666 -> 6 tiles of 128 rows, ragged tail
    hidden2 = (jax.random.normal(k_h2, (B2, S2, H2), dtype=jnp.float32) * 0.05
               ).astype(jnp.bfloat16)
    w2 = (jax.random.normal(k_w2, (H2, 1), dtype=jnp.float32) * (1.0 / H2 ** 0.5)
          ).astype(jnp.bfloat16)

    values2 = v_head_pallas(hidden2, w2, tile_m=128)
    values2 = jax.block_until_ready(values2)

    values2_ref = jnp.squeeze(
        jnp.dot(hidden2.astype(jnp.float32), w2.astype(jnp.float32),
                precision=jax.lax.Precision.HIGHEST), -1).astype(jnp.bfloat16)

    assert values2.shape == (B2, S2)
    assert values2.dtype == jnp.bfloat16
    assert jnp.allclose(values2.astype(jnp.float32),
                        values2_ref.astype(jnp.float32), atol=1e-2, rtol=1e-2)

    print("KERNEL_OK")
</pallas_src>

<mosaic_0001>
module attributes {stable_mosaic.version = 11 : i64} {
  func.func @_vhead_kernel(%arg0: i32, %arg1: memref<16x32xbf16, #tpu.memory_space<vmem>>, %arg2: memref<32x1xbf16, #tpu.memory_space<vmem>>, %arg3: memref<1x16xbf16, #tpu.memory_space<vmem>>) attributes {dimension_semantics = [#tpu.dimension_semantics<parallel>], iteration_bounds = array<i64: 1>, scalar_prefetch = 0 : i64, scratch_operands = 0 : i64, tpu.core_type = #tpu.core_type<tc>, window_params = [{transform_indices = @transform_0, window_bounds = array<i64: 16, 32>}, {pipeline_mode = #tpu.pipeline_mode<synchronous>, transform_indices = @transform_1, window_bounds = array<i64: 32, 1>}, {transform_indices = @transform_2, window_bounds = array<i64: 1, 16>}]} {
    %c0 = arith.constant 0 : index
    %c0_0 = arith.constant 0 : index
    %0 = vector.load %arg1[%c0, %c0_0] : memref<16x32xbf16, #tpu.memory_space<vmem>>, vector<16x32xbf16>
    %c0_1 = arith.constant 0 : index
    %c0_2 = arith.constant 0 : index
    %1 = vector.load %arg2[%c0_1, %c0_2] : memref<32x1xbf16, #tpu.memory_space<vmem>>, vector<32x1xbf16>
    %cst = arith.constant dense<0.000000e+00> : vector<16x1xf32>
    %2 = tpu.matmul %0, %1, %cst {dimension_numbers = #tpu.dot_dimension_numbers<[1], [0], [0], [1], [0, 0, 1, 1], [], []>} : vector<16x32xbf16>, vector<32x1xbf16>, vector<16x1xf32> -> vector<16x1xf32>
    %3 = tpu.transpose %2, [1, 0] : vector<16x1xf32> -> vector<1x16xf32>
    %4 = arith.truncf %3 : vector<1x16xf32> to vector<1x16xbf16>
    %c0_3 = arith.constant 0 : index
    %c0_4 = arith.constant 0 : index
    %5 = vector.load %arg3[%c0_3, %c0_4] : memref<1x16xbf16, #tpu.memory_space<vmem>>, vector<1x16xbf16>
    tpu.vector_store %arg3[%c0_3, %c0_4], %4 {strides = array<i32>} : memref<1x16xbf16, #tpu.memory_space<vmem>>, vector<1x16xbf16>,
    return
  }
  func.func @transform_0(%arg0: i32) -> (i32, i32) {
    %c0_i32 = arith.constant 0 : i32
    %c0_i32_0 = arith.constant 0 : i32
    return %arg0, %c0_i32 : i32, i32
  }
  func.func @transform_1(%arg0: i32) -> (i32, i32) {
    %c0_i32 = arith.constant 0 : i32
    %c0_i32_0 = arith.constant 0 : i32
    %c0_i32_1 = arith.constant 0 : i32
    return %c0_i32, %c0_i32_0 : i32, i32
  }
  func.func @transform_2(%arg0: i32) -> (i32, i32) {
    %c0_i32 = arith.constant 0 : i32
    %c0_i32_0 = arith.constant 0 : i32
    return %c0_i32, %arg0 : i32, i32
  }
}

</mosaic_0001>

<llo_original>
// kernel: tpu_custom_call.1
$region0: #{tpu_custom_call.1}
  #allocation0 [shape = 'u32[]', space=smem, size = 0x4, offset = 0x4, fixed_abs, tag = 'smem constant byte address 0x4 - core index']
  #allocation1 [shape = 'u32[144,128]{1,0:T(1,128)}', space=vmem, size = 0x12000, scoped, tag = 'internal scratch']
  %s0 = inlined_call_operand.vmem [shape: bf16[16,32], index: 0, kind: input, shape index: {}]
  %s1 = inlined_call_operand.vmem [shape: bf16[32,1], index: 1, kind: input, shape index: {}]
  %s2 = inlined_call_operand.hbm [shape: bf16[1,16], index: 2, kind: output, shape index: {}]
  %s3 = sld [smem:[#allocation0]]
  $region18: #{tpu_custom_call.1} parent=0
    _
  %s5 = ssub.s32 1, %s3
  %s6 = scalar_select 0, %s5, %s3
  $region1: #{tpu_custom_call.1} parent=0
    #allocation2 [shape = 'u8[512]{0}', space=vmem, size = 0x400, scoped, tag = 'output window, operand 0, single buffered']
    #allocation3 [shape = 's32[1]{0}', space=sflag, size = 0x4, scoped, tag = 'scoped memory for tpu_custom_call.1']
    %7 = vsyncpa [#allocation3], 0
    // Predicated region
    $region2: #{tpu_custom_call.1} parent=1 // pred_check
      _
    $region3: #{tpu_custom_call.1} parent=1 // pred_check_branch
      %9 = sbr.rel (0) target = $region5
    $region4: #{tpu_custom_call.1} parent=1 // pred_region
      _
    $region5: #{tpu_custom_call.1} parent=1 // pred_fallthru
      _
    // Predicated region
    $region6: #{tpu_custom_call.1} parent=1 // pred_check
      _
    $region7: #{tpu_custom_call.1} parent=1 // pred_check_branch
      %11 = sbr.rel (0) target = $region9
    $region8: #{tpu_custom_call.1} parent=1 // pred_region
      _
    $region9: #{tpu_custom_call.1} parent=1 // pred_fallthru
      _
    %v13 = vld [vmem:[%s0] sm:$0xf]
    %v14 = vld [vmem:[%s0 + $0x4] sm:$0xf]
    %v15 = vld [vmem:[%s1] sm:$0xf]
    %v16 = vld [vmem:[%s1 + $0x4] sm:$0xf]
    %v17 = vld [vmem:[%s1 + $0x8] sm:$0xf]
    %v18 = vld [vmem:[%s1 + $0xc] sm:$0xf]
    %v21 = vunpack.c.l.b16 %v13
    %v22 = vunpack.c.l.b16 %v14
    %v23 = vpack.c.b16 %v22, %v21
    %v28 = vunpack.c.l.b16 %v15
    %v29 = vunpack.c.l.b16 %v16
    %v30 = vunpack.c.l.b16 %v17
    %v31 = vunpack.c.l.b16 %v18
    %v32 = vpack.c.b16 %v29, %v28
    %v33 = vpack.c.b16 %v31, %v30
    %vm36 = vcmask 261120
    %v38 = vsel %vm36, %v23, 0
    %40 = vmatprep.subr.bf16.mxu0 0
    %41 = vmatpush1.bf16.msra.mxu0 %v32
    %42 = vmatprep.subr.bf16.mxu0 0
    %43 = vmatpush1.bf16.msra.mxu0 %v33
    %44 = vmatprep.subr.bf16.mxu0 0
    %45 = vmatpush1.bf16.msra.mxu0 0
    %46 = vmatprep.subr.bf16.mxu0 0
    %47 = vmatpush1.bf16.msra.mxu0 0
    %48 = vmatprep.subr.bf16.mxu0 0
    %49 = vmatpush1.bf16.msra.mxu0 0
    %50 = vmatprep.subr.bf16.mxu0 0
    %51 = vmatpush1.bf16.msra.mxu0 0
    %52 = vmatprep.subr.bf16.mxu0 0
    %53 = vmatpush1.bf16.msra.mxu0 0
    %54 = vmatprep.subr.bf16.mxu0 0
    %55 = vmatpush1.bf16.msra.mxu0 0
    %56 = vmatprep.subr.bf16.mxu0 0
    %57 = vmatpush1.bf16.msra.mxu0 0
    %58 = vmatprep.subr.bf16.mxu0 0
    %59 = vmatpush1.bf16.msra.mxu0 0
    %60 = vmatprep.subr.bf16.mxu0 0
    %61 = vmatpush1.bf16.msra.mxu0 0
    %62 = vmatprep.subr.bf16.mxu0 0
    %63 = vmatpush1.bf16.msra.mxu0 0
    %64 = vmatprep.subr.bf16.mxu0 0
    %65 = vmatpush1.bf16.msra.mxu0 0
    %66 = vmatprep.subr.bf16.mxu0 0
    %67 = vmatpush1.bf16.msra.mxu0 0
    %68 = vmatprep.subr.bf16.mxu0 0
    %69 = vmatpush1.bf16.msra.mxu0 0
    %70 = vmatprep.subr.bf16.mxu0 0
    %71 = vmatpush1.bf16.msra.mxu0 0
    %72 = vmatprep.mubr.bf16.mxu0 0
    %73 = vmatmul.mubr.bf16.gmra.mrb[0].mxu0 %v38
    %v74 = vpop.f32.mrb[0].mxu0
    %v75 = vadd.f32 0.0, %v74
    %v76 = vpop.f32.mrb[0].mxu0
    %v77 = vpop.f32.mrb[0].mxu0
    %v78 = vadd.f32 0.0, %v77
    %v79 = vpop.f32.mrb[0].mxu0
    %80 = vdwg.mxu0
    %81 = vxpose.xlu0.b32.start [1/16] %v75, 128
    %82 = vxpose.xlu0.b32.cont [2/16] %v78, 128
    %83 = vxpose.xlu0.b32.cont [3/16] 0.0, 128
    %84 = vxpose.xlu0.b32.cont [4/16] 0.0, 128
    %85 = vxpose.xlu0.b32.cont [5/16] 0.0, 128
    %86 = vxpose.xlu0.b32.cont [6/16] 0.0, 128
    %87 = vxpose.xlu0.b32.cont [7/16] 0.0, 128
    %88 = vxpose.xlu0.b32.cont [8/16] 0.0, 128
    %89 = vxpose.xlu0.b32.cont [9/16] 0.0, 128
    %90 = vxpose.xlu0.b32.cont [10/16] 0.0, 128
    %91 = vxpose.xlu0.b32.cont [11/16] 0.0, 128
    %92 = vxpose.xlu0.b32.cont [12/16] 0.0, 128
    %93 = vxpose.xlu0.b32.cont [13/16] 0.0, 128
    %94 = vxpose.xlu0.b32.cont [14/16] 0.0, 128
    %95 = vxpose.xlu0.b32.cont [15/16] 0.0, 128
    %96 = vxpose.xlu0.b32.end [16/16] 0.0, 128
    %v97 = vpop.trf.xlu0
    %v98 = vpop.trf.xlu0
    %v99 = vpop.trf.xlu0
    %v100 = vpop.trf.xlu0
    %v101 = vpop.trf.xlu0
    %v102 = vpop.trf.xlu0
    %v103 = vpop.trf.xlu0
    %v104 = vpop.trf.xlu0
    %v105 = vpop.trf.xlu0
    %v106 = vpop.trf.xlu0
    %v107 = vpop.trf.xlu0
    %v108 = vpop.trf.xlu0
    %v109 = vpop.trf.xlu0
    %v110 = vpop.trf.xlu0
    %v111 = vpop.trf.xlu0
    %v112 = vpop.trf.xlu0
    %v113 = vpack.c.bf16 %v97, %v97
    %vm114 = vcmask 122880
    %vm115 = vsmask.f32 256
    %vm116 = vmand %vm114, %vm115
    %v117 = vld [vmem:[#allocation2] sm:$0x1]
    %v118 = vsel %vm116, %v113, %v117
    %119 = vst [vmem:[#allocation2] sm:$0x1] %v118
    // Predicated region
    $region10: #{tpu_custom_call.1} parent=1 // pred_check
      _
    $region11: #{tpu_custom_call.1} parent=1 // pred_check_branch
      %121 = sbr.rel (0) target = $region13
    $region12: #{tpu_custom_call.1} parent=1 // pred_region
      %s123 = ssub.s32 16, 16
      %124 = vsyncadd [#allocation3], %s123
      %s126 = sshll.u32 [#allocation2], 4
      %s127 = int_to_ptr.vmem [resolvable:$true] %s126
      %129 = dma.vmem_to_hbm [thread:$0]  %s127, 16, %s2, [#allocation3]
    $region13: #{tpu_custom_call.1} parent=1 // pred_fallthru
      _
    // Predicated region
    $region14: #{tpu_custom_call.1} parent=1 // pred_check
      _
    $region15: #{tpu_custom_call.1} parent=1 // pred_check_branch
      %131 = sbr.rel (0) target = $region17
    $region16: #{tpu_custom_call.1} parent=1 // pred_region
      %132 = dma.done [#allocation3], 16
    $region17: #{tpu_custom_call.1} parent=1 // pred_fallthru
      _
    %133 = vsyncpa [#allocation3], 1

</llo_original>
